<compile_context>
chip_gen: v6e
topology: v6e:2x2x1
jax: 0.10.0
libtpu: 0.0.40
codegen_flags: <defaults>
</compile_context>

<pallas_src>
import functools

import jax
import jax.numpy as jnp
from jax.experimental import pallas as pl
from jax.experimental.pallas import tpu as pltpu

_MIB = 1024 * 1024
_LANE = 128


def _round_up(n, m):
    return (n + m - 1) // m * m


def _cdiv(a, b):
    return -(-a // b)


def _sublane_unit(dtype):
    # f32 -> 8, bf16/f16 -> 16, int8/fp8 -> 32 (VMEM tile second-to-last dim).
    return max(8, 32 // jnp.dtype(dtype).itemsize)


def _vmem_caps():
    """Return (physical VMEM bytes, budget for one double-buffered grid step)."""
    cap = None
    try:
        info = pltpu.get_tpu_info()
        cap = int(getattr(info, "vmem_capacity_bytes", 0)) or None
    except Exception:
        cap = None
    if cap is None:
        cap = 64 * _MIB                       # conservative default (v7x-sized)
    budget = min(cap - 24 * _MIB, int(cap * 0.75))   # ~96 MiB on 128 MiB parts, ~40 MiB on v7x
    return cap, max(budget, 16 * _MIB)


# ---------------------------------------------------------------------------
# Path A: fully fused kernel (pool + channel MLP + sigmoid + rescale + ReLU).
# ---------------------------------------------------------------------------
def _cca_fused_kernel(x_ref, bd_ref, gb_ref, o_ref, *, inv_hw):
    # x_ref : (R, HW)  native dtype, R = bt*Fx rows = (batch, channel) pairs
    # bd_ref: (R, R)   f32, block-diagonal kron(I_bt, (Wx/2)^T)
    # gb_ref: (R, 1)   f32, per-row g-side bias = (avg_g @ Wg/2 + (bx+bg)/2)
    x = x_ref[...]

    # Exact f32 spatial mean per (batch, channel) row.  The block's last dim
    # is the true HW (full-dim block), so no padding lanes enter the sum.
    avg = jnp.sum(x, axis=-1, keepdims=True, dtype=jnp.float32) * inv_hw      # (R, 1)

    # Channel mixing with no cross-lane reshapes: tiny mat-vec on the
    # block-diagonal weight, then add the hoisted g-side bias.
    att = jnp.dot(bd_ref[...], avg, preferred_element_type=jnp.float32) + gb_ref[...]
    scale = jax.nn.sigmoid(att).astype(x.dtype)                               # (R, 1)

    # Rescale + ReLU in the native dtype (no full-tile f32 copy).
    o_ref[...] = jnp.maximum(x * scale, 0).astype(o_ref.dtype)


def _fused_step_bytes(r_blk, hw, itemsize, sub):
    """Conservative double-buffered VMEM footprint of one fused grid step."""
    rpad = _round_up(r_blk, sub)
    cpad = _round_up(hw, _LANE)
    x_blk = rpad * cpad * itemsize                     # one x block (in or out)
    gb_blk = _round_up(r_blk, 8) * _LANE * 4           # (R,1) f32, lane-padded
    bd_blk = _round_up(r_blk, 8) * _round_up(r_blk, _LANE) * 4
    # x in + x out double-buffered; bd/gb also counted double-buffered.
    return 2 * (2 * x_blk + gb_blk + bd_blk)


def _pick_bt(B, Fx, HWx, x_dtype, budget):
    """Choose batches-per-step: alignment-valid, fits VMEM, >=4 steps if possible."""
    sub = _sublane_unit(x_dtype)
    itemsize = jnp.dtype(x_dtype).itemsize
    divs = [d for d in range(1, B + 1) if B % d == 0]
    # Block rows bt*Fx must be a multiple of the sublane unit, or the full dim.
    valid = [d for d in divs if (d * Fx) % sub == 0 or d == B]
    # Keep the block-diagonal weight small unless there is no alternative.
    small = [d for d in valid if d * Fx <= max(Fx, 1024)]
    if small:
        valid = small
    fitting = [d for d in valid
               if _fused_step_bytes(d * Fx, HWx, itemsize, sub) <= budget]
    if not fitting:
        return None

    target = 4 * _MIB                                   # ~2-8 MiB x blocks pipeline well

    def x_blk_bytes(d):
        return _round_up(d * Fx, sub) * _round_up(HWx, _LANE) * itemsize

    def score(d):
        steps = B // d
        pclass = 0 if steps >= 4 else (1 if steps >= 2 else 2)
        return (pclass, abs(x_blk_bytes(d) - target))

    return min(fitting, key=score)


def _run_fused(x2d, bd, gb_rows, inv_hw, r_blk, vmem_cap, donate_x):
    R, HW = x2d.shape
    sub = _sublane_unit(x2d.dtype)
    itemsize = jnp.dtype(x2d.dtype).itemsize
    step_bytes = _fused_step_bytes(r_blk, HW, itemsize, sub)
    vmem_limit = int(min(vmem_cap - 8 * _MIB, max(step_bytes + 8 * _MIB, 32 * _MIB)))

    kernel = functools.partial(_cca_fused_kernel, inv_hw=inv_hw)
    return pl.pallas_call(
        kernel,
        out_shape=jax.ShapeDtypeStruct((R, HW), x2d.dtype),
        grid_spec=pltpu.PrefetchScalarGridSpec(
            num_scalar_prefetch=0,
            grid=(R // r_blk,),
            in_specs=[
                # x rows: full (unpadded) HW as the last block dim -> no pad/slice.
                pl.BlockSpec((r_blk, HW), lambda b: (b, 0)),
                # Grid-invariant block-diagonal weight (fetched once).
                pl.BlockSpec((r_blk, r_blk), lambda b: (0, 0)),
                # Per-row g-side bias for this batch block.
                pl.BlockSpec((r_blk, 1), lambda b: (b, 0)),
            ],
            out_specs=pl.BlockSpec((r_blk, HW), lambda b: (b, 0)),
        ),
        input_output_aliases=({0: 0} if donate_x else {}),
        compiler_params=pltpu.CompilerParams(
            dimension_semantics=("parallel",),
            vmem_limit_bytes=vmem_limit,
        ),
    )(x2d, bd, gb_rows)


# ---------------------------------------------------------------------------
# Path B: lane-dense tiled rescale + ReLU (per-row scale), cdiv grid, no pads.
# ---------------------------------------------------------------------------
def _rescale_relu_kernel(x_ref, s_ref, o_ref):
    o_ref[...] = jnp.maximum(x_ref[...] * s_ref[...], 0).astype(o_ref.dtype)


def _run_rescale(x2d, s_rows, vmem_cap, donate_x):
    R, HW = x2d.shape
    sub = _sublane_unit(x2d.dtype)
    itemsize = jnp.dtype(x2d.dtype).itemsize

    # Balanced lane tiles <= 2048 (keeps the mem-bound kernel near roofline);
    # edge tiles are handled by the cdiv grid (masked), not by padding.
    n_l = _cdiv(_round_up(HW, _LANE), 2048)
    lt = _round_up(_cdiv(HW, n_l), _LANE)
    if lt >= HW:
        lt = HW                      # full-dim block bypasses the 128 rule
    n_r = _cdiv(_round_up(R, sub), 512)
    rt = _round_up(_cdiv(R, n_r), sub)
    if rt >= R:
        rt = R                       # full-dim block bypasses the sublane rule

    rpad = _round_up(rt, sub)
    cpad = _round_up(lt, _LANE)
    step_bytes = 2 * (2 * rpad * cpad * itemsize + rpad * _LANE * itemsize)
    vmem_limit = int(min(vmem_cap - 8 * _MIB, max(step_bytes + 8 * _MIB, 32 * _MIB)))

    return pl.pallas_call(
        _rescale_relu_kernel,
        out_shape=jax.ShapeDtypeStruct((R, HW), x2d.dtype),
        grid_spec=pltpu.PrefetchScalarGridSpec(
            num_scalar_prefetch=0,
            grid=(_cdiv(R, rt), _cdiv(HW, lt)),
            in_specs=[
                pl.BlockSpec((rt, lt), lambda r, c: (r, c)),
                pl.BlockSpec((rt, 1), lambda r, c: (r, 0)),
            ],
            out_specs=pl.BlockSpec((rt, lt), lambda r, c: (r, c)),
        ),
        input_output_aliases=({0: 0} if donate_x else {}),
        compiler_params=pltpu.CompilerParams(
            dimension_semantics=("parallel", "parallel"),
            vmem_limit_bytes=vmem_limit,
        ),
    )(x2d, s_rows)


# ---------------------------------------------------------------------------
# Wrapper.
# ---------------------------------------------------------------------------
def cca_forward(g, x, params, *, force_two_pass=False, donate_x=False):
    """g: (B, F_g, Hg, Wg), x: (B, F_x, Hx, Wx)  ->  (B, F_x, Hx, Wx).

    donate_x=True aliases x's buffer to the output (only if the caller does
    not reuse x afterwards).
    """
    wx, bx, wg, bg = params          # wx: (Fx,Fx), bx: (1,Fx), wg: (Fg,Fx), bg: (1,Fx)
    B, Fx, Hx, Wx = x.shape
    HWx = Hx * Wx
    f32 = jnp.float32

    wx_half = 0.5 * wx.astype(f32)                                   # (Fx, Fx)
    wg_half = 0.5 * wg.astype(f32)                                   # (Fg, Fx)
    b_half = (0.5 * (bx.astype(f32) + bg.astype(f32))).reshape(1, Fx)

    # g contribution is independent of x and tiny: pool with XLA (reads g
    # exactly once, same HBM traffic as pooling it in-kernel) and fold the
    # Wg/2 matmul and bias into a per-(batch,channel)-row f32 bias.
    avg_g = jnp.mean(g.astype(f32), axis=(2, 3))                     # (B, Fg)
    g_side = avg_g @ wg_half + b_half                                # (B, Fx)
    gb_rows = g_side.reshape(B * Fx, 1)

    # Sublane-dense, contiguous (free) 2-D view of x: rows = (batch, channel).
    x2d = x.reshape(B * Fx, HWx)

    vmem_cap, budget = _vmem_caps()
    bt = None if force_two_pass else _pick_bt(B, Fx, HWx, x.dtype, budget)

    if bt is not None:
        r_blk = bt * Fx
        # Block-diagonal (Wx/2)^T: avoids any cross-lane reshape/concat in-kernel.
        bd = jnp.kron(jnp.eye(bt, dtype=f32), wx_half.T)             # (r_blk, r_blk)
        out2d = _run_fused(x2d, bd, gb_rows, 1.0 / HWx, r_blk, vmem_cap, donate_x)
        return out2d.reshape(B, Fx, Hx, Wx)

    # Path B: per-sample image does not fit the VMEM budget.  XLA does the
    # trivial pool + tiny MLP (one extra read of x); the bandwidth-dominant
    # rescale+ReLU is a lane-dense tiled Pallas kernel with masked edge tiles.
    avg_x = jnp.mean(x.astype(f32), axis=(2, 3))                     # (B, Fx)
    att = avg_x @ wx_half + g_side                                   # (B, Fx)
    scale = jax.nn.sigmoid(att).astype(x.dtype).reshape(B * Fx, 1)
    out2d = _run_rescale(x2d, scale, vmem_cap, donate_x)
    return out2d.reshape(B, Fx, Hx, Wx)


def init_params(key, F_g, F_x, dtype=jnp.float32):
    """Deterministic init mimicking nn.Linear default (uniform +- 1/sqrt(fan_in)).
    Weights are stored already transposed: (in_features, out_features)."""
    k1, k2, k3, k4 = jax.random.split(key, 4)
    lim_x = 1.0 / (F_x ** 0.5)
    lim_g = 1.0 / (F_g ** 0.5)
    wx = jax.random.uniform(k1, (F_x, F_x), dtype, -lim_x, lim_x)
    bx = jax.random.uniform(k2, (1, F_x), dtype, -lim_x, lim_x)
    wg = jax.random.uniform(k3, (F_g, F_x), dtype, -lim_g, lim_g)
    bg = jax.random.uniform(k4, (1, F_x), dtype, -lim_g, lim_g)
    return wx, bx, wg, bg


def cca_reference(g, x, params):
    """Pure-JAX reference matching the PyTorch forward."""
    wx, bx, wg, bg = params
    avg_x = jnp.mean(x, axis=(2, 3))                      # (B, F_x)
    avg_g = jnp.mean(g, axis=(2, 3))                      # (B, F_g)
    att_x = avg_x @ wx + bx                               # (B, F_x)
    att_g = avg_g @ wg + bg                               # (B, F_x)
    scale = jax.nn.sigmoid((att_x + att_g) / 2.0)
    out = x * scale[:, :, None, None]
    return jnp.maximum(out, 0.0)


if __name__ == "__main__":
    # Config 1: small channel count (exercises the sublane-dense fused path).
    B, F_g, F_x, H, W = 2, 4, 4, 16, 16
    key = jax.random.PRNGKey(0)
    kg, kx, kp = jax.random.split(key, 3)
    g = jax.random.normal(kg, (B, F_g, H, W), jnp.float32)
    x = jax.random.normal(kx, (B, F_x, H, W), jnp.float32)
    params = init_params(kp, F_g, F_x)

    ref = cca_reference(g, x, params)

    out_fused = jax.block_until_ready(cca_forward(g, x, params))
    assert out_fused.shape == (B, F_x, H, W)
    assert jnp.allclose(out_fused, ref, atol=1e-5, rtol=1e-5), "fused path mismatch"

    # Also exercise the tiled two-pass fallback (used for very large H*W).
    out_tiled = jax.block_until_ready(cca_forward(g, x, params, force_two_pass=True))
    assert jnp.allclose(out_tiled, ref, atol=1e-5, rtol=1e-5), "two-pass path mismatch"

    # Config 2: multi-step fused grid (bt < B), checks pipelined Path A.
    B2, F_g2, F_x2, H2, W2 = 8, 8, 16, 8, 8
    kg2, kx2, kp2 = jax.random.split(jax.random.PRNGKey(0), 3)
    g2 = jax.random.normal(kg2, (B2, F_g2, H2, W2), jnp.float32)
    x2 = jax.random.normal(kx2, (B2, F_x2, H2, W2), jnp.float32)
    params2 = init_params(kp2, F_g2, F_x2)
    ref2 = cca_reference(g2, x2, params2)
    out2 = jax.block_until_ready(cca_forward(g2, x2, params2))
    assert jnp.allclose(out2, ref2, atol=1e-5, rtol=1e-5), "multi-step fused mismatch"

    print("KERNEL_OK")
</pallas_src>

<mosaic_0001>
module attributes {stable_mosaic.version = 11 : i64} {
  func.func @_cca_fused_kernel(%arg0: i32, %arg1: memref<8x256xf32, #tpu.memory_space<vmem>>, %arg2: memref<8x8xf32, #tpu.memory_space<vmem>>, %arg3: memref<8x1xf32, #tpu.memory_space<vmem>>, %arg4: memref<8x256xf32, #tpu.memory_space<vmem>>) attributes {dimension_semantics = [#tpu.dimension_semantics<parallel>], iteration_bounds = array<i64: 1>, scalar_prefetch = 0 : i64, scratch_operands = 0 : i64, tpu.core_type = #tpu.core_type<tc>, window_params = [{transform_indices = @transform_0, window_bounds = array<i64: 8, 256>}, {pipeline_mode = #tpu.pipeline_mode<synchronous>, transform_indices = @transform_1, window_bounds = array<i64: 8, 8>}, {transform_indices = @transform_2, window_bounds = array<i64: 8, 1>}, {transform_indices = @transform_3, window_bounds = array<i64: 8, 256>}]} {
    %c0 = arith.constant 0 : index
    %c0_0 = arith.constant 0 : index
    %0 = vector.load %arg1[%c0, %c0_0] : memref<8x256xf32, #tpu.memory_space<vmem>>, vector<8x256xf32>
    %cst = arith.constant dense<0.000000e+00> : vector<8xf32>
    %1 = vector.multi_reduction <add>, %0, %cst [1] : vector<8x256xf32> to vector<8xf32>
    %2 = vector.shape_cast %1 : vector<8xf32> to vector<8x1xf32>
    %cst_1 = arith.constant 3.906250e-03 : f32
    %3 = vector.broadcast %cst_1 : f32 to vector<8x1xf32>
    %4 = arith.mulf %2, %3 : vector<8x1xf32>
    %c0_2 = arith.constant 0 : index
    %c0_3 = arith.constant 0 : index
    %5 = vector.load %arg2[%c0_2, %c0_3] : memref<8x8xf32, #tpu.memory_space<vmem>>, vector<8x8xf32>
    %cst_4 = arith.constant dense<0.000000e+00> : vector<8x1xf32>
    %6 = tpu.matmul %5, %4, %cst_4 {dimension_numbers = #tpu.dot_dimension_numbers<[1], [0], [0], [1], [0, 0, 1, 1], [], []>} : vector<8x8xf32>, vector<8x1xf32>, vector<8x1xf32> -> vector<8x1xf32>
    %c0_5 = arith.constant 0 : index
    %c0_6 = arith.constant 0 : index
    %7 = vector.load %arg3[%c0_5, %c0_6] : memref<8x1xf32, #tpu.memory_space<vmem>>, vector<8x1xf32>
    %8 = arith.addf %6, %7 : vector<8x1xf32>
    %9 = arith.negf %8 : vector<8x1xf32>
    %10 = math.exp %9 : vector<8x1xf32>
    %cst_7 = arith.constant 1.000000e+00 : f32
    %11 = vector.broadcast %cst_7 : f32 to vector<8x1xf32>
    %12 = arith.addf %11, %10 : vector<8x1xf32>
    %13 = arith.divf %11, %12 : vector<8x1xf32>
    %14 = vector.broadcast %13 : vector<8x1xf32> to vector<8x256xf32>
    %15 = arith.mulf %0, %14 : vector<8x256xf32>
    %cst_8 = arith.constant 0.000000e+00 : f32
    %16 = vector.broadcast %cst_8 : f32 to vector<8x256xf32>
    %17 = arith.maximumf %15, %16 : vector<8x256xf32>
    %c0_9 = arith.constant 0 : index
    %c0_10 = arith.constant 0 : index
    %18 = vector.load %arg4[%c0_9, %c0_10] : memref<8x256xf32, #tpu.memory_space<vmem>>, vector<8x256xf32>
    tpu.vector_store %arg4[%c0_9, %c0_10], %17 {strides = array<i32>} : memref<8x256xf32, #tpu.memory_space<vmem>>, vector<8x256xf32>,
    return
  }
  func.func @transform_0(%arg0: i32) -> (i32, i32) {
    %c0_i32 = arith.constant 0 : i32
    %c0_i32_0 = arith.constant 0 : i32
    return %arg0, %c0_i32 : i32, i32
  }
  func.func @transform_1(%arg0: i32) -> (i32, i32) {
    %c0_i32 = arith.constant 0 : i32
    %c0_i32_0 = arith.constant 0 : i32
    %c0_i32_1 = arith.constant 0 : i32
    return %c0_i32, %c0_i32_0 : i32, i32
  }
  func.func @transform_2(%arg0: i32) -> (i32, i32) {
    %c0_i32 = arith.constant 0 : i32
    %c0_i32_0 = arith.constant 0 : i32
    return %arg0, %c0_i32 : i32, i32
  }
  func.func @transform_3(%arg0: i32) -> (i32, i32) {
    %c0_i32 = arith.constant 0 : i32
    %c0_i32_0 = arith.constant 0 : i32
    return %arg0, %c0_i32 : i32, i32
  }
}

</mosaic_0001>

<llo_original>
// kernel: tpu_custom_call.1
$region0: #{tpu_custom_call.1}
  #allocation0 [shape = 'u32[]', space=smem, size = 0x4, offset = 0x4, fixed_abs, tag = 'smem constant byte address 0x4 - core index']
  #allocation1 [shape = 'u32[144,128]{1,0:T(1,128)}', space=vmem, size = 0x12000, scoped, tag = 'internal scratch']
  %s0 = inlined_call_operand.hbm [shape: f32[8,256], index: 0, kind: input, shape index: {}]
  %s1 = inlined_call_operand.vmem [shape: f32[8,8], index: 1, kind: input, shape index: {}]
  %s2 = inlined_call_operand.vmem [shape: f32[8,1], index: 2, kind: input, shape index: {}]
  %s3 = inlined_call_operand.hbm [shape: f32[8,256], index: 3, kind: output, shape index: {}]
  %s4 = sld [smem:[#allocation0]]
  $region26: #{tpu_custom_call.1} parent=0
    _
  %s6 = ssub.s32 1, %s4
  %s7 = scalar_select 0, %s6, %s4
  $region1: #{tpu_custom_call.1} parent=0
    #allocation2 [shape = 'u8[8192]{0}', space=vmem, size = 0x2000, scoped, tag = 'input window, operand 0, single buffered']
    #allocation3 [shape = 's32[1]{0}', space=sflag, size = 0x4, scoped, tag = 'scoped memory for tpu_custom_call.1']
    #allocation4 [shape = 's32[1]{0}', space=sflag, size = 0x4, scoped, tag = 'scoped memory for tpu_custom_call.1']
    #allocation5 [shape = 'u8[8192]{0}', space=vmem, size = 0x2000, scoped, tag = 'output window, operand 0, single buffered']
    %8 = vsyncpa [#allocation3], 0
    %9 = vsyncpa [#allocation4], 0
    // Predicated region
    $region2: #{tpu_custom_call.1} parent=1 // pred_check
      _
    $region3: #{tpu_custom_call.1} parent=1 // pred_check_branch
      %11 = sbr.rel (0) target = $region5
    $region4: #{tpu_custom_call.1} parent=1 // pred_region
      %s13 = ssub.s32 256, 256
      %14 = vsyncadd [#allocation3], %s13
      %s16 = sshll.u32 [#allocation2], 4
      %s17 = int_to_ptr.vmem [resolvable:$true] %s16
      %19 = dma.hbm_to_vmem [thread:$0]  %s0, 256, %s17, [#allocation3]
    $region5: #{tpu_custom_call.1} parent=1 // pred_fallthru
      _
    // Predicated region
    $region6: #{tpu_custom_call.1} parent=1 // pred_check
      _
    $region7: #{tpu_custom_call.1} parent=1 // pred_check_branch
      %21 = sbr.rel (0) target = $region9
    $region8: #{tpu_custom_call.1} parent=1 // pred_region
      _
    $region9: #{tpu_custom_call.1} parent=1 // pred_fallthru
      _
    // Predicated region
    $region10: #{tpu_custom_call.1} parent=1 // pred_check
      _
    $region11: #{tpu_custom_call.1} parent=1 // pred_check_branch
      %23 = sbr.rel (0) target = $region13
    $region12: #{tpu_custom_call.1} parent=1 // pred_region
      _
    $region13: #{tpu_custom_call.1} parent=1 // pred_fallthru
      _
    // Predicated region
    $region14: #{tpu_custom_call.1} parent=1 // pred_check
      _
    $region15: #{tpu_custom_call.1} parent=1 // pred_check_branch
      %25 = sbr.rel (0) target = $region17
    $region16: #{tpu_custom_call.1} parent=1 // pred_region
      %26 = dma.done [#allocation3], 256
    $region17: #{tpu_custom_call.1} parent=1 // pred_fallthru
      _
    %v27 = vld [vmem:[#allocation2] sm:$0xff]
    %v28 = vld [vmem:[#allocation2 + $0x8] sm:$0xff]
    %v29 = vadd.f32 %v27, %v28
    %30 = vadd.xlane.f32.xlu0 %v29
    %v31 = vpop.xlane.xlu0 %30
    %v32 = vmul.f32 %v31, 0.00390625
    %v33 = vld [vmem:[%s1] sm:$0xff]
    %v34 = vld [vmem:[%s2] sm:$0xff]
    %vm35 = vcmask 64512
    %v37 = vsel %vm35, %v33, 0
    %39 = vmatprep.subr.mxu0 0.0
    %40 = vmatpush1.msra.mxu0 0.0
    %41 = vmatprep.subr.mxu0 0.0
    %42 = vmatpush1.msra.mxu0 0.0
    %43 = vmatprep.subr.mxu0 0.0
    %44 = vmatpush1.msra.mxu0 0.0
    %45 = vmatprep.subr.mxu0 0.0
    %46 = vmatpush1.msra.mxu0 0.0
    %47 = vmatprep.subr.mxu0 0.0
    %48 = vmatpush1.msra.mxu0 0.0
    %49 = vmatprep.subr.mxu0 0.0
    %50 = vmatpush1.msra.mxu0 0.0
    %51 = vmatprep.subr.mxu0 0.0
    %52 = vmatpush1.msra.mxu0 0.0
    %53 = vmatprep.subr.mxu0 0.0
    %54 = vmatpush1.msra.mxu0 0.0
    %55 = vmatprep.subr.mxu0 0.0
    %56 = vmatpush1.msra.mxu0 0.0
    %57 = vmatprep.subr.mxu0 0.0
    %58 = vmatpush1.msra.mxu0 0.0
    %59 = vmatprep.subr.mxu0 0.0
    %60 = vmatpush1.msra.mxu0 0.0
    %61 = vmatprep.subr.mxu0 0.0
    %62 = vmatpush1.msra.mxu0 0.0
    %63 = vmatprep.subr.mxu0 0.0
    %64 = vmatpush1.msra.mxu0 0.0
    %65 = vmatprep.subr.mxu0 0.0
    %66 = vmatpush1.msra.mxu0 0.0
    %67 = vmatprep.subr.mxu0 0.0
    %68 = vmatpush1.msra.mxu0 0.0
    %69 = vmatprep.subr.mxu0 0.0
    %70 = vmatpush1.msra.mxu0 %v32
    %71 = vmatprep.subr.mxu0 0.0
    %72 = vmatpush2.msra.mxu0 0.0
    %73 = vmatprep.subr.mxu0 0.0
    %74 = vmatpush2.msra.mxu0 0.0
    %75 = vmatprep.subr.mxu0 0.0
    %76 = vmatpush2.msra.mxu0 0.0
    %77 = vmatprep.subr.mxu0 0.0
    %78 = vmatpush2.msra.mxu0 0.0
    %79 = vmatprep.subr.mxu0 0.0
    %80 = vmatpush2.msra.mxu0 0.0
    %81 = vmatprep.subr.mxu0 0.0
    %82 = vmatpush2.msra.mxu0 0.0
    %83 = vmatprep.subr.mxu0 0.0
    %84 = vmatpush2.msra.mxu0 0.0
    %85 = vmatprep.subr.mxu0 0.0
    %86 = vmatpush2.msra.mxu0 0.0
    %87 = vmatprep.subr.mxu0 0.0
    %88 = vmatpush2.msra.mxu0 0.0
    %89 = vmatprep.subr.mxu0 0.0
    %90 = vmatpush2.msra.mxu0 0.0
    %91 = vmatprep.subr.mxu0 0.0
    %92 = vmatpush2.msra.mxu0 0.0
    %93 = vmatprep.subr.mxu0 0.0
    %94 = vmatpush2.msra.mxu0 0.0
    %95 = vmatprep.subr.mxu0 0.0
    %96 = vmatpush2.msra.mxu0 0.0
    %97 = vmatprep.subr.mxu0 0.0
    %98 = vmatpush2.msra.mxu0 0.0
    %99 = vmatprep.subr.mxu0 0.0
    %100 = vmatpush2.msra.mxu0 0.0
    %101 = vmatprep.subr.mxu0 0.0
    %102 = vmatpush2.msra.mxu0 0.0
    %103 = vmatprep.mubr.f32.mxu0 0.0
    %104 = vmatmul.mubr.f32.gmra.mxu0 %v37
    %v105 = vpop.f32.mrf.mxu0
    %v106 = vadd.f32 %v34, %v105
    %v107 = vpop.f32.mrf.mxu0
    %108 = vdwg.mxu0
    %v109 = vxor.u32 %v106, 2147483648
    %v110 = vmul.f32 %v109, 1.442695
    %v111 = vpow.pop %v110
    %v112 = vadd.f32 %v111, 1.0
    %v113 = vrcp.pop %v112
    %v114 = vmul.f32 1.0, %v113
    %116 = vset.pattern.permute.xlu0 0
    %117 = vperm.xlu0 %116, %v114
    %v118 = vpop.permute.xlu0 %117
    %v120 = vmul.f32 %v27, %v118
    %v121 = vmul.f32 %v28, %v118
    %v122 = vmax.f32 %v120, 0.0
    %v123 = vmax.f32 %v121, 0.0
    %124 = vst [vmem:[#allocation5] sm:$0xff] %v122
    %125 = vst [vmem:[#allocation5 + $0x8] sm:$0xff] %v123
    // Predicated region
    $region18: #{tpu_custom_call.1} parent=1 // pred_check
      _
    $region19: #{tpu_custom_call.1} parent=1 // pred_check_branch
      %127 = sbr.rel (0) target = $region21
    $region20: #{tpu_custom_call.1} parent=1 // pred_region
      %s129 = ssub.s32 256, 256
      %130 = vsyncadd [#allocation4], %s129
      %s132 = sshll.u32 [#allocation5], 4
      %s133 = int_to_ptr.vmem [resolvable:$true] %s132
      %135 = dma.vmem_to_hbm [thread:$0]  %s133, 256, %s3, [#allocation4]
    $region21: #{tpu_custom_call.1} parent=1 // pred_fallthru
      _
    // Predicated region
    $region22: #{tpu_custom_call.1} parent=1 // pred_check
      _
    $region23: #{tpu_custom_call.1} parent=1 // pred_check_branch
      %137 = sbr.rel (0) target = $region25
    $region24: #{tpu_custom_call.1} parent=1 // pred_region
      %138 = dma.done [#allocation4], 256
    $region25: #{tpu_custom_call.1} parent=1 // pred_fallthru
      _
    %139 = vsyncpa [#allocation3], 1
    %140 = vsyncpa [#allocation4], 1

</llo_original>
